<compile_context>
chip_gen: v6e
topology: v6e:2x2x1
jax: 0.10.0
libtpu: 0.0.40
codegen_flags: <defaults>
</compile_context>

<pallas_src>
import functools

import jax
import jax.numpy as jnp
from jax.experimental import pallas as pl
from jax.experimental.pallas import tpu as pltpu


def _round_up(v, m):
    return (v + m - 1) // m * m


def _pair(v):
    return tuple(v) if isinstance(v, (tuple, list)) else (v, v)


def _tpu_generation():
    try:
        kind = jax.devices()[0].device_kind.lower()
    except Exception:
        return 0
    for g in (7, 6, 5, 4):
        if str(g) in kind:
            return g
    return 0


_GEN = _tpu_generation()
_IS_V7 = _GEN >= 7

# Generation-aware tiling caps / VMEM budget.
M_CAP = 512                       # single M tile for this workload (M <= 400)
K_CAP = 2304                      # exact divisor of K=4608 / 9216 (no pad waste)
N_CAP = 512 if _IS_V7 else 1024   # v7x: keep a parallel grid axis >= 2 on 1024-wide layers
_VMEM_LIMIT = (48 if _IS_V7 else 64) * 1024 * 1024


def _tile(dim, align, cap):
    """Tile size (multiple of `align`, ~<= cap) and padded extent for `dim`."""
    d = _round_up(dim, align)
    if d <= cap:
        return d, d
    n = -(-d // cap)                       # number of tiles
    t = _round_up(-(-d // n), align)       # near-even split, aligned
    return t, t * n


def _tile_m(m):
    """M tile: 16-aligned (bf16 sublane packing); single tile whenever it fits."""
    return _tile(m, 16, M_CAP)


# ----------------------------- Pallas kernel -------------------------------


def _mm_bn_kernel(x_ref, w_ref, sb_ref, *rest, relu, has_res, res_scale):
    """acc (+)= x @ w over K tiles in an f32 VMEM scratch; on the last K tile
    apply the folded-BN affine, the optional residual merge
    (y*res_scale + residual) and the optional ReLU, and emit bf16."""
    if has_res:
        r_ref, o_ref, acc_ref = rest
    else:
        o_ref, acc_ref = rest

    k = pl.program_id(2)
    prod = jnp.dot(x_ref[...], w_ref[...], preferred_element_type=jnp.float32)

    @pl.when(k == 0)
    def _():                      # no zeros+accumulate pass: write first product
        acc_ref[...] = prod

    @pl.when(k > 0)
    def _():
        acc_ref[...] += prod

    @pl.when(k == pl.num_programs(2) - 1)
    def _():
        sb = sb_ref[...]                                  # (2, TN) f32
        y = acc_ref[...] * sb[0:1, :] + sb[1:2, :]
        if has_res:
            y = y * res_scale + r_ref[...].astype(jnp.float32)
        if relu:
            y = jnp.maximum(y, 0.0)
        o_ref[...] = y.astype(o_ref.dtype)


def fused_matmul_bn(patches, pp, residual=None, residual_scale=1.0):
    """(patches @ w) * scale + bias [ *res_scale + residual ] [ReLU] -> bf16.

    patches: (M, K) bf16.  Weight / scale+bias come pre-packed (padded, bf16 /
    (2,Np) f32) from `pack_conv`.  residual: optional (M, Nout) bf16."""
    M, K = patches.shape
    Kp, Np = pp['k_pad'], pp['n_pad']
    TK, TN = pp['tk'], pp['tn']
    Nout = pp['n_out']
    TM, Mp = _tile_m(M)

    xp = patches
    if Mp != M or Kp != K:
        xp = jnp.pad(patches, ((0, Mp - M), (0, Kp - K)))

    has_res = residual is not None
    # NOTE: for BasicRFB / BasicRFB_a the post-residual activation is always
    # ReLU; if this helper is reused for a module with a different epilogue,
    # pass the activation explicitly instead of relying on this default.
    relu = True if has_res else pp['relu']

    args = [xp, pp['w'], pp['sb']]
    in_specs = [
        pl.BlockSpec((TM, TK), lambda i, j, k: (i, k)),
        pl.BlockSpec((TK, TN), lambda i, j, k: (k, j)),
        pl.BlockSpec((2, TN), lambda i, j, k: (0, j)),
    ]
    if has_res:
        rp = residual if residual.dtype == jnp.bfloat16 else residual.astype(jnp.bfloat16)
        rp = jnp.pad(rp, ((0, Mp - M), (0, Np - Nout)))
        args.append(rp)
        # TODO(synk): the residual is only consumed at k==last; pl.Buffered(1)
        # (or a manual last-k DMA) would shave one VMEM buffer, not done here.
        in_specs.append(pl.BlockSpec((TM, TN), lambda i, j, k: (i, j)))

    out = pl.pallas_call(
        functools.partial(_mm_bn_kernel, relu=relu, has_res=has_res,
                          res_scale=float(residual_scale)),
        out_shape=jax.ShapeDtypeStruct((Mp, Np), jnp.bfloat16),
        grid_spec=pltpu.PrefetchScalarGridSpec(
            num_scalar_prefetch=0,
            grid=(Mp // TM, Np // TN, Kp // TK),
            in_specs=in_specs,
            out_specs=pl.BlockSpec((TM, TN), lambda i, j, k: (i, j)),
            scratch_shapes=[pltpu.VMEM((TM, TN), jnp.float32)],
        ),
        compiler_params=pltpu.CompilerParams(
            dimension_semantics=("parallel", "parallel", "arbitrary"),
            vmem_limit_bytes=_VMEM_LIMIT),
    )(*args)
    return out[:M, :Nout]


# ------------------------------ JAX glue -----------------------------------


def im2col(x, kh, kw, stride, padding, dilation):
    """x: NHWC (bf16) -> (N*Ho*Wo, kh*kw*C) patches (K ordered (kh,kw,C), C fastest)."""
    sh, sw = _pair(stride)
    ph, pw = _pair(padding)
    dh, dw = _pair(dilation)
    N, H, W, C = x.shape
    if (kh, kw) == (1, 1) and (ph, pw) == (0, 0):       # 1x1 fast path: no stack
        sl = x[:, ::sh, ::sw, :]
        _, Ho, Wo, _ = sl.shape
        return sl.reshape(N * Ho * Wo, C), (N, Ho, Wo)
    xp = jnp.pad(x, ((0, 0), (ph, ph), (pw, pw), (0, 0)))
    Hp, Wp = H + 2 * ph, W + 2 * pw
    Ho = (Hp - (dh * (kh - 1) + 1)) // sh + 1
    Wo = (Wp - (dw * (kw - 1) + 1)) // sw + 1
    # TODO(synk): 3x3 patches are still materialized via XLA im2col (kh*kw x
    # bf16 activation duplication in HBM); keeping the padded activation VMEM
    # resident and looping the taps in-kernel would remove this, but the
    # required (Ho,Wo,C)->(Ho*Wo,C) in-kernel reshape (Wo=20 not sublane
    # aligned) is relayout-risky, so it is left as glue.
    cols = []
    for i in range(kh):
        for j in range(kw):
            sl = xp[:, i * dh:i * dh + (Ho - 1) * sh + 1:sh,
                    j * dw:j * dw + (Wo - 1) * sw + 1:sw, :]
            cols.append(sl)
    pat = jnp.stack(cols, axis=3)              # (N, Ho, Wo, kh*kw, C)
    return pat.reshape(N * Ho * Wo, kh * kw * C), (N, Ho, Wo)


def conv2d_bn_act(pp, x, residual=None, residual_scale=1.0):
    """BasicConv.forward (conv -> BN -> ReLU), optionally with the RFB residual
    merge fused into the matmul epilogue.  x: NHWC -> NHWC bf16."""
    if x.dtype != jnp.bfloat16:
        x = x.astype(jnp.bfloat16)
    patches, (n, ho, wo) = im2col(x, pp['kh'], pp['kw'],
                                  pp['stride'], pp['padding'], pp['dilation'])
    res2 = None
    if residual is not None:
        res2 = residual.reshape(-1, residual.shape[-1])
    y = fused_matmul_bn(patches, pp, residual=res2,
                        residual_scale=residual_scale)
    # TODO(synk): BasicConv.up_size > 0 (bilinear F.upsample) is never used on
    # the executable path of this model, so it is not implemented.
    return y.reshape(n, ho, wo, pp['n_out'])


# -------------------- parameter init & weight pre-packing ------------------


def init_basic_conv(key, cin, cout, kernel_size, stride=1, padding=0,
                    dilation=1, relu=True, bn=True, bias=False):
    kh, kw = _pair(kernel_size)
    keys = jax.random.split(key, 5)
    fan_in = cin * kh * kw
    w = jax.random.normal(keys[0], (cout, cin, kh, kw), jnp.float32) * \
        jnp.sqrt(2.0 / fan_in)
    if bn:  # eval-mode BatchNorm folded to per-channel affine
        gamma = 0.75 + 0.5 * jax.random.uniform(keys[1], (cout,), jnp.float32)
        beta = 0.05 * jax.random.normal(keys[2], (cout,), jnp.float32)
        mean = 0.05 * jax.random.normal(keys[3], (cout,), jnp.float32)
        var = 0.75 + 0.5 * jax.random.uniform(keys[4], (cout,), jnp.float32)
        scale = gamma / jnp.sqrt(var + 1e-5)
        bias_v = beta - mean * scale
    else:
        scale = jnp.ones((cout,), jnp.float32)
        bias_v = (0.05 * jax.random.normal(keys[1], (cout,), jnp.float32)
                  if bias else jnp.zeros((cout,), jnp.float32))
    return dict(w=w, scale=scale, bias=bias_v, stride=stride, padding=padding,
                dilation=dilation, relu=relu)


def pack_conv(raw):
    """Pre-pack a BasicConv for the fused matmul kernel: (K,N) weight padded to
    per-layer tile multiples, cast to bf16; scale/bias packed as one (2,Np)."""
    # TODO(synk): int8 weight quantization (scale folded into sb[0]) would halve
    # weight HBM bytes on v5e/v6e; kept bf16 to preserve reference numerics.
    w = raw['w']
    cout, cin, kh, kw = w.shape
    K, Nout = cin * kh * kw, cout
    w2 = jnp.transpose(w, (2, 3, 1, 0)).reshape(K, Nout)   # (kh,kw,cin) x cout
    TK, Kp = _tile(K, 128, K_CAP)
    TN, Np = _tile(Nout, 128, N_CAP)
    wp = jnp.pad(w2, ((0, Kp - K), (0, Np - Nout))).astype(jnp.bfloat16)
    sb = jnp.stack([jnp.pad(raw['scale'], (0, Np - Nout)),
                    jnp.pad(raw['bias'], (0, Np - Nout))]).astype(jnp.float32)
    return dict(w=wp, sb=sb, kh=kh, kw=kw, n_out=Nout,
                k_pad=Kp, n_pad=Np, tk=TK, tn=TN,
                stride=raw['stride'], padding=raw['padding'],
                dilation=raw['dilation'], relu=raw['relu'])


def pack_fused_1x1(raw_list):
    """Fuse several 1x1/stride-1/ReLU BasicConvs on the same input into one
    matmul (concat weights along Cout); record the split sizes for slicing."""
    fused = dict(
        w=jnp.concatenate([r['w'] for r in raw_list], axis=0),
        scale=jnp.concatenate([r['scale'] for r in raw_list]),
        bias=jnp.concatenate([r['bias'] for r in raw_list]),
        stride=raw_list[0]['stride'], padding=0, dilation=1, relu=True)
    packed = pack_conv(fused)
    packed['splits'] = [int(r['w'].shape[0]) for r in raw_list]
    return packed


def apply_fused_1x1(pp, x):
    y = conv2d_bn_act(pp, x)
    outs, off = [], 0
    for c in pp['splits']:
        outs.append(y[..., off:off + c])
        off += c
    return outs


# ------------------------------ RFB modules --------------------------------


def init_rfb_a(key, in_planes, out_planes, stride=1, scale=0.1):
    inter = in_planes // 4
    ks = iter(jax.random.split(key, 16))
    b0 = [init_basic_conv(next(ks), in_planes, inter, 1, stride=1),
          init_basic_conv(next(ks), inter, inter, 3, 1, padding=1, relu=False)]
    b1 = [init_basic_conv(next(ks), in_planes, inter, 1, 1),
          init_basic_conv(next(ks), inter, inter, (3, 1), 1, padding=(1, 0)),
          init_basic_conv(next(ks), inter, inter, 3, 1, padding=3, dilation=3,
                          relu=False)]
    b2 = [init_basic_conv(next(ks), in_planes, inter, 1, 1),
          init_basic_conv(next(ks), inter, inter, (1, 3), stride,
                          padding=(0, 1)),
          init_basic_conv(next(ks), inter, inter, 3, 1, padding=3, dilation=3,
                          relu=False)]
    b3 = [init_basic_conv(next(ks), in_planes, inter // 2, 1, 1),
          init_basic_conv(next(ks), inter // 2, inter // 4 * 3, (1, 3), 1,
                          padding=(0, 1)),
          init_basic_conv(next(ks), inter // 4 * 3, inter, (3, 1), stride,
                          padding=(1, 0)),
          init_basic_conv(next(ks), inter, inter, 3, 1, padding=5, dilation=5,
                          relu=False)]
    branches = [b0, b1, b2, b3]
    p = dict(scale=scale)
    p['entry'] = pack_fused_1x1([b[0] for b in branches])   # all 1x1/stride-1
    p['entry_branches'] = (0, 1, 2, 3)
    p['rest'] = [[pack_conv(c) for c in b[1:]] for b in branches]
    p['ConvLinear'] = pack_conv(init_basic_conv(next(ks), 4 * inter,
                                                out_planes, 1, 1, relu=False))
    p['shortcut'] = pack_conv(init_basic_conv(next(ks), in_planes, out_planes,
                                              1, stride, relu=False))
    return p


def init_rfb(key, in_planes, out_planes, stride=1, scale=0.1, visual=1):
    inter = in_planes // 8
    ks = iter(jax.random.split(key, 16))
    b0 = [init_basic_conv(next(ks), in_planes, 2 * inter, 1, stride=stride),
          init_basic_conv(next(ks), 2 * inter, 2 * inter, 3, 1, padding=visual,
                          dilation=visual, relu=False)]
    b1 = [init_basic_conv(next(ks), in_planes, inter, 1, 1),
          init_basic_conv(next(ks), inter, 2 * inter, (3, 3), stride,
                          padding=(1, 1)),
          init_basic_conv(next(ks), 2 * inter, 2 * inter, 3, 1,
                          padding=visual + 1, dilation=visual + 1, relu=False)]
    b2 = [init_basic_conv(next(ks), in_planes, inter, 1, 1),
          init_basic_conv(next(ks), inter, inter // 2 * 3, 3, 1, padding=1),
          init_basic_conv(next(ks), inter // 2 * 3, 2 * inter, 3, stride,
                          padding=1),
          init_basic_conv(next(ks), 2 * inter, 2 * inter, 3, 1,
                          padding=2 * visual + 1, dilation=2 * visual + 1,
                          relu=False)]
    branches = [b0, b1, b2]
    p = dict(scale=scale)
    # branch0's entry 1x1 carries the module stride; only fuse stride-1 entries
    fused_idx = (0, 1, 2) if stride == 1 else (1, 2)
    p['entry'] = pack_fused_1x1([branches[i][0] for i in fused_idx])
    p['entry_branches'] = fused_idx
    p['rest'] = [[pack_conv(c) for c in (b[1:] if i in fused_idx else b)]
                 for i, b in enumerate(branches)]
    p['ConvLinear'] = pack_conv(init_basic_conv(next(ks), 6 * inter,
                                                out_planes, 1, 1, relu=False))
    p['shortcut'] = pack_conv(init_basic_conv(next(ks), in_planes, out_planes,
                                              1, stride, relu=False))
    return p


def apply_rfb_module(p, x):
    """Shared forward for BasicRFB / BasicRFB_a."""
    # TODO(synk): each branch chain could be fused into a single kernel with
    # intermediates kept in VMEM (emit_pipeline over weight tiles) to cut the
    # per-launch overhead of the tiny tail layers; kept as separate fused
    # conv+BN+ReLU matmuls here.
    entry_outs = apply_fused_1x1(p['entry'], x)
    outs, ei = [], 0
    for bi, rest in enumerate(p['rest']):
        if bi in p['entry_branches']:
            y = entry_outs[ei]
            ei += 1
        else:
            y = x
        for c in rest:
            y = conv2d_bn_act(c, y)
        outs.append(y)
    out = jnp.concatenate(outs, axis=-1)          # torch.cat dim=1 == channels
    short = conv2d_bn_act(p['shortcut'], x)
    # ConvLinear matmul with fused epilogue: relu(convlinear*scale + shortcut)
    return conv2d_bn_act(p['ConvLinear'], out, residual=short,
                         residual_scale=p['scale'])


# -------------------------------- RFBNet -----------------------------------


def init_rfbnet(key):
    ks = iter(jax.random.split(key, 40))
    params = {}
    # Synthetic 25-layer `base` (the real VGG builder is external to the source
    # file).  Contracts enforced by RFBNet.forward: base[:23] ends in 512
    # channels (input of Norm = BasicRFB_a(512, 512)), base[-1] ends in 1024
    # channels (input of BasicRFB1(1024, 1024)).  'relu' entries are placeholder
    # nn.ReLU layers (skipped at apply time: the fused conv already ReLU'd).
    base = [None] * 25
    base[0] = pack_conv(init_basic_conv(next(ks), 3, 32, 3, padding=1))
    base[2] = pack_conv(init_basic_conv(next(ks), 32, 64, 3, padding=1))
    base[4] = pack_conv(init_basic_conv(next(ks), 64, 128, 3, padding=1))
    base[6] = pack_conv(init_basic_conv(next(ks), 128, 256, 3, padding=1))
    base[8] = pack_conv(init_basic_conv(next(ks), 256, 512, 3, padding=1))
    for i in list(range(1, 9, 2)) + list(range(9, 23)):
        base[i] = 'relu'
    base[23] = pack_conv(init_basic_conv(next(ks), 512, 1024, 3, padding=1))
    base[24] = pack_conv(init_basic_conv(next(ks), 1024, 1024, 1))
    params['base'] = base

    params['Norm'] = init_rfb_a(next(ks), 512, 512, stride=1, scale=1.0)
    params['RFB1'] = init_rfb(next(ks), 1024, 1024, scale=1.0, visual=2)
    params['RFB2'] = init_rfb(next(ks), 1024, 512, stride=2, scale=1.0, visual=2)
    params['RFB3'] = init_rfb(next(ks), 512, 256, stride=2, scale=1.0, visual=1)
    params['conva1'] = pack_conv(init_basic_conv(next(ks), 256, 128, 1, 1))
    params['conva2'] = pack_conv(init_basic_conv(next(ks), 128, 256, 3, 1))
    params['conva3'] = pack_conv(init_basic_conv(next(ks), 256, 128, 1, 1))
    params['conva4'] = pack_conv(init_basic_conv(next(ks), 128, 256, 3, 1))
    return params


def _apply_base_layer(layer, x):
    if layer == 'relu' or layer is None:
        # placeholder nn.ReLU: the preceding fused conv already applied ReLU,
        # so this is idempotent -> skipped (no extra full-tensor pass).
        return x
    return conv2d_bn_act(layer, x)


def rfbnet_forward(params, x_nchw):
    """RFBNet.forward up to the multi-scale `sources` list (NCHW in / NCHW out)."""
    x = jnp.transpose(x_nchw, (0, 2, 3, 1)).astype(jnp.bfloat16)   # -> NHWC bf16
    sources = []
    for k in range(23):
        x = _apply_base_layer(params['base'][k], x)
    s = apply_rfb_module(params['Norm'], x)
    sources.append(s)
    for k in range(23, len(params['base'])):
        x = _apply_base_layer(params['base'][k], x)
    sources.append(x)
    s1 = apply_rfb_module(params['RFB1'], x)
    sources.append(s1)
    s2 = apply_rfb_module(params['RFB2'], s1)
    sources.append(s2)
    s3 = apply_rfb_module(params['RFB3'], s2)
    sources.append(s3)
    s4 = conv2d_bn_act(params['conva1'], s3)
    s5 = conv2d_bn_act(params['conva2'], s4)
    sources.append(s5)
    s6 = conv2d_bn_act(params['conva3'], s5)
    s7 = conv2d_bn_act(params['conva4'], s6)
    sources.append(s7)
    # TODO(synk): the remainder of RFBNet.forward (self.sources transforms,
    # pyramid_ext, self.conv1..6 / self.bn1..5 FPN merge, loc/conf heads,
    # softmax) references attributes never defined in the original source file
    # ("cannot run"); we stop at the multi-scale sources.
    return tuple(jnp.transpose(s, (0, 3, 1, 2)).astype(jnp.float32)
                 for s in sources)   # -> NCHW f32


if __name__ == "__main__":
    key = jax.random.PRNGKey(0)
    pkey, xkey = jax.random.split(key)
    params = init_rfbnet(pkey)
    x = jax.random.normal(xkey, (1, 3, 20, 20), jnp.float32)   # NCHW, like PyTorch

    sources = rfbnet_forward(params, x)
    sources = jax.block_until_ready(sources)

    expected = [(1, 512, 20, 20), (1, 1024, 20, 20), (1, 1024, 20, 20),
                (1, 512, 10, 10), (1, 256, 5, 5), (1, 256, 3, 3), (1, 256, 1, 1)]
    assert [tuple(map(int, s.shape)) for s in sources] == expected, \
        [tuple(s.shape) for s in sources]
    assert all(bool(jnp.all(jnp.isfinite(s))) for s in sources)
    print("KERNEL_OK")
</pallas_src>

<mosaic_0001>
module attributes {stable_mosaic.version = 11 : i64} {
  func.func @_mm_bn_kernel(%arg0: i32, %arg1: i32, %arg2: i32, %arg3: memref<400x128xbf16, #tpu.memory_space<vmem>>, %arg4: memref<128x128xbf16, #tpu.memory_space<vmem>>, %arg5: memref<2x128xf32, #tpu.memory_space<vmem>>, %arg6: memref<400x128xbf16, #tpu.memory_space<vmem>>, %arg7: memref<400x128xf32, #tpu.memory_space<vmem>>) attributes {dimension_semantics = [#tpu.dimension_semantics<parallel>, #tpu.dimension_semantics<parallel>, #tpu.dimension_semantics<arbitrary>], iteration_bounds = array<i64: 1, 1, 1>, scalar_prefetch = 0 : i64, scratch_operands = 1 : i64, tpu.core_type = #tpu.core_type<tc>, window_params = [{transform_indices = @transform_0, window_bounds = array<i64: 400, 128>}, {transform_indices = @transform_1, window_bounds = array<i64: 128, 128>}, {transform_indices = @transform_2, window_bounds = array<i64: 2, 128>}, {transform_indices = @transform_3, window_bounds = array<i64: 400, 128>}]} {
    %c0 = arith.constant 0 : index
    %c0_0 = arith.constant 0 : index
    %0 = vector.load %arg3[%c0, %c0_0] : memref<400x128xbf16, #tpu.memory_space<vmem>>, vector<400x128xbf16>
    %c0_1 = arith.constant 0 : index
    %c0_2 = arith.constant 0 : index
    %1 = vector.load %arg4[%c0_1, %c0_2] : memref<128x128xbf16, #tpu.memory_space<vmem>>, vector<128x128xbf16>
    %cst = arith.constant dense<0.000000e+00> : vector<400x128xf32>
    %2 = tpu.matmul %0, %1, %cst {dimension_numbers = #tpu.dot_dimension_numbers<[1], [0], [0], [1], [0, 0, 1, 1], [], []>} : vector<400x128xbf16>, vector<128x128xbf16>, vector<400x128xf32> -> vector<400x128xf32>
    %c0_i32 = arith.constant 0 : i32
    %3 = arith.cmpi eq, %arg2, %c0_i32 : i32
    %4 = arith.extui %3 : i1 to i32
    %c0_i32_3 = arith.constant 0 : i32
    %5 = arith.cmpi ne, %4, %c0_i32_3 : i32
    scf.if %5 {
      %c0_8 = arith.constant 0 : index
      %c0_9 = arith.constant 0 : index
      %12 = vector.load %arg7[%c0_8, %c0_9] : memref<400x128xf32, #tpu.memory_space<vmem>>, vector<400x128xf32>
      tpu.vector_store %arg7[%c0_8, %c0_9], %2 {strides = array<i32>} : memref<400x128xf32, #tpu.memory_space<vmem>>, vector<400x128xf32>,
    } else {
    }
    %c0_i32_4 = arith.constant 0 : i32
    %6 = arith.cmpi sgt, %arg2, %c0_i32_4 : i32
    %7 = arith.extui %6 : i1 to i32
    %c0_i32_5 = arith.constant 0 : i32
    %8 = arith.cmpi ne, %7, %c0_i32_5 : i32
    scf.if %8 {
      %c0_8 = arith.constant 0 : index
      %c0_9 = arith.constant 0 : index
      %12 = vector.load %arg7[%c0_8, %c0_9] : memref<400x128xf32, #tpu.memory_space<vmem>>, vector<400x128xf32>
      %13 = arith.addf %12, %2 : vector<400x128xf32>
      %c0_10 = arith.constant 0 : index
      %c0_11 = arith.constant 0 : index
      %14 = vector.load %arg7[%c0_10, %c0_11] : memref<400x128xf32, #tpu.memory_space<vmem>>, vector<400x128xf32>
      tpu.vector_store %arg7[%c0_10, %c0_11], %13 {strides = array<i32>} : memref<400x128xf32, #tpu.memory_space<vmem>>, vector<400x128xf32>,
    } else {
    }
    %c0_i32_6 = arith.constant 0 : i32
    %9 = arith.cmpi eq, %arg2, %c0_i32_6 : i32
    %10 = arith.extui %9 : i1 to i32
    %c0_i32_7 = arith.constant 0 : i32
    %11 = arith.cmpi ne, %10, %c0_i32_7 : i32
    scf.if %11 {
      %c0_8 = arith.constant 0 : index
      %c0_9 = arith.constant 0 : index
      %12 = vector.load %arg5[%c0_8, %c0_9] : memref<2x128xf32, #tpu.memory_space<vmem>>, vector<2x128xf32>
      %c0_10 = arith.constant 0 : index
      %c0_11 = arith.constant 0 : index
      %13 = vector.load %arg7[%c0_10, %c0_11] : memref<400x128xf32, #tpu.memory_space<vmem>>, vector<400x128xf32>
      %14 = vector.extract_strided_slice %12 {offsets = [0, 0], sizes = [1, 128], strides = [1, 1]} : vector<2x128xf32> to vector<1x128xf32>
      %15 = vector.broadcast %14 : vector<1x128xf32> to vector<400x128xf32>
      %16 = arith.mulf %13, %15 : vector<400x128xf32>
      %17 = vector.extract_strided_slice %12 {offsets = [1, 0], sizes = [1, 128], strides = [1, 1]} : vector<2x128xf32> to vector<1x128xf32>
      %18 = vector.broadcast %17 : vector<1x128xf32> to vector<400x128xf32>
      %19 = arith.addf %16, %18 : vector<400x128xf32>
      %cst_12 = arith.constant 0.000000e+00 : f32
      %20 = vector.broadcast %cst_12 : f32 to vector<400x128xf32>
      %21 = arith.maximumf %19, %20 : vector<400x128xf32>
      %22 = arith.truncf %21 : vector<400x128xf32> to vector<400x128xbf16>
      %c0_13 = arith.constant 0 : index
      %c0_14 = arith.constant 0 : index
      %23 = vector.load %arg6[%c0_13, %c0_14] : memref<400x128xbf16, #tpu.memory_space<vmem>>, vector<400x128xbf16>
      tpu.vector_store %arg6[%c0_13, %c0_14], %22 {strides = array<i32>} : memref<400x128xbf16, #tpu.memory_space<vmem>>, vector<400x128xbf16>,
    } else {
    }
    return
  }
  func.func @transform_0(%arg0: i32, %arg1: i32, %arg2: i32) -> (i32, i32) {
    %c0_i32 = arith.constant 0 : i32
    return %arg0, %arg2 : i32, i32
  }
  func.func @transform_1(%arg0: i32, %arg1: i32, %arg2: i32) -> (i32, i32) {
    %c0_i32 = arith.constant 0 : i32
    return %arg2, %arg1 : i32, i32
  }
  func.func @transform_2(%arg0: i32, %arg1: i32, %arg2: i32) -> (i32, i32) {
    %c0_i32 = arith.constant 0 : i32
    %c0_i32_0 = arith.constant 0 : i32
    return %c0_i32, %arg1 : i32, i32
  }
  func.func @transform_3(%arg0: i32, %arg1: i32, %arg2: i32) -> (i32, i32) {
    %c0_i32 = arith.constant 0 : i32
    return %arg0, %arg1 : i32, i32
  }
}

</mosaic_0001>

<llo_original>
// kernel: tpu_custom_call.1
$region0: #{tpu_custom_call.1}
  #allocation0 [shape = 'u32[]', space=smem, size = 0x4, offset = 0x4, fixed_abs, tag = 'smem constant byte address 0x4 - core index']
  #allocation1 [shape = 'u32[144,128]{1,0:T(1,128)}', space=vmem, size = 0x12000, scoped, tag = 'internal scratch']
  #allocation2 [shape = 'f32[400,128]{1,0:T(8,128)}', space=vmem, size = 0x32000, scoped, tag = 'scratch operand']
  %s0 = inlined_call_operand.hbm [shape: bf16[400,128], index: 0, kind: input, shape index: {}]
  %s1 = inlined_call_operand.hbm [shape: bf16[128,128], index: 1, kind: input, shape index: {}]
  %s2 = inlined_call_operand.vmem [shape: f32[2,128], index: 2, kind: input, shape index: {}]
  %s3 = inlined_call_operand.hbm [shape: bf16[400,128], index: 3, kind: output, shape index: {}]
  %s4 = sld [smem:[#allocation0]]
  $region42: #{tpu_custom_call.1} parent=0
    _
  %s6 = ssub.s32 1, %s4
  %s7 = scalar_select 0, %s6, %s4
  $region1: #{tpu_custom_call.1} parent=0
    #allocation3 [shape = 'u8[102400]{0}', space=vmem, size = 0x19000, scoped, tag = 'input window, operand 0, single buffered']
    #allocation4 [shape = 's32[1]{0}', space=sflag, size = 0x4, scoped, tag = 'scoped memory for tpu_custom_call.1']
    #allocation5 [shape = 's32[1]{0}', space=sflag, size = 0x4, scoped, tag = 'scoped memory for tpu_custom_call.1']
    #allocation6 [shape = 'u8[32768]{0}', space=vmem, size = 0x8000, scoped, tag = 'input window, operand 1, single buffered']
    #allocation7 [shape = 's32[1]{0}', space=sflag, size = 0x4, scoped, tag = 'scoped memory for tpu_custom_call.1']
    #allocation8 [shape = 'u8[102400]{0}', space=vmem, size = 0x19000, scoped, tag = 'output window, operand 0, single buffered']
    %8 = vsyncpa [#allocation4], 0
    %9 = vsyncpa [#allocation7], 0
    %10 = vsyncpa [#allocation5], 0
    // Predicated region
    $region2: #{tpu_custom_call.1} parent=1 // pred_check
      _
    $region3: #{tpu_custom_call.1} parent=1 // pred_check_branch
      %12 = sbr.rel (0) target = $region5
    $region4: #{tpu_custom_call.1} parent=1 // pred_region
      %s14 = ssub.s32 3200, 3200
      %15 = vsyncadd [#allocation4], %s14
      %s16 = sshll.u32 [#allocation3], 4
      %s17 = int_to_ptr.vmem [resolvable:$true] %s16
      %22 = dma.hbm_to_vmem [thread:$0]  %s0, 3200, %s17, [#allocation4], 64, 64, 4
    $region5: #{tpu_custom_call.1} parent=1 // pred_fallthru
      _
    // Predicated region
    $region6: #{tpu_custom_call.1} parent=1 // pred_check
      _
    $region7: #{tpu_custom_call.1} parent=1 // pred_check_branch
      %24 = sbr.rel (0) target = $region9
    $region8: #{tpu_custom_call.1} parent=1 // pred_region
      %s26 = ssub.s32 1024, 1024
      %27 = vsyncadd [#allocation7], %s26
      %s28 = sshll.u32 [#allocation6], 4
      %s29 = int_to_ptr.vmem [resolvable:$true] %s28
      %34 = dma.hbm_to_vmem [thread:$0]  %s1, 1024, %s29, [#allocation7], 64, 64, 4
    $region9: #{tpu_custom_call.1} parent=1 // pred_fallthru
      _
    // Predicated region
    $region10: #{tpu_custom_call.1} parent=1 // pred_check
      _
    $region11: #{tpu_custom_call.1} parent=1 // pred_check_branch
      %36 = sbr.rel (0) target = $region13
    $region12: #{tpu_custom_call.1} parent=1 // pred_region
      _
    $region13: #{tpu_custom_call.1} parent=1 // pred_fallthru
      _
    // Predicated region
    $region14: #{tpu_custom_call.1} parent=1 // pred_check
      _
    $region15: #{tpu_custom_call.1} parent=1 // pred_check_branch
      %38 = sbr.rel (0) target = $region17
    $region16: #{tpu_custom_call.1} parent=1 // pred_region
      %39 = dma.done [#allocation4], 3200
    $region17: #{tpu_custom_call.1} parent=1 // pred_fallthru
      _
    // Predicated region
    $region18: #{tpu_custom_call.1} parent=1 // pred_check
      _
    $region19: #{tpu_custom_call.1} parent=1 // pred_check_branch
      %41 = sbr.rel (0) target = $region21
    $region20: #{tpu_custom_call.1} parent=1 // pred_region
      %42 = dma.done [#allocation7], 1024
    $region21: #{tpu_custom_call.1} parent=1 // pred_fallthru
      _
    %v44 = vld [vmem:[#allocation3] sm:$0xf]
    %v45 = vld [vmem:[#allocation3 + $0x4] sm:$0xf]
    %v46 = vld [vmem:[#allocation3 + $0x8] sm:$0xf]
    %v47 = vld [vmem:[#allocation3 + $0xc] sm:$0xf]
    %v48 = vld [vmem:[#allocation3 + $0x10] sm:$0xf]
    %v49 = vld [vmem:[#allocation3 + $0x14] sm:$0xf]
    %v50 = vld [vmem:[#allocation3 + $0x18] sm:$0xf]
    %v51 = vld [vmem:[#allocation3 + $0x1c] sm:$0xf]
    %v52 = vld [vmem:[#allocation3 + $0x20] sm:$0xf]
    %v53 = vld [vmem:[#allocation3 + $0x24] sm:$0xf]
    %v54 = vld [vmem:[#allocation3 + $0x28] sm:$0xf]
    %v55 = vld [vmem:[#allocation3 + $0x2c] sm:$0xf]
    %v56 = vld [vmem:[#allocation3 + $0x30] sm:$0xf]
    %v57 = vld [vmem:[#allocation3 + $0x34] sm:$0xf]
    %v58 = vld [vmem:[#allocation3 + $0x38] sm:$0xf]
    %v59 = vld [vmem:[#allocation3 + $0x3c] sm:$0xf]
    %v60 = vld [vmem:[#allocation3 + $0x40] sm:$0xf]
    %v61 = vld [vmem:[#allocation3 + $0x44] sm:$0xf]
    %v62 = vld [vmem:[#allocation3 + $0x48] sm:$0xf]
    %v63 = vld [vmem:[#allocation3 + $0x4c] sm:$0xf]
    %v64 = vld [vmem:[#allocation3 + $0x50] sm:$0xf]
    %v65 = vld [vmem:[#allocation3 + $0x54] sm:$0xf]
    %v66 = vld [vmem:[#allocation3 + $0x58] sm:$0xf]
    %v67 = vld [vmem:[#allocation3 + $0x5c] sm:$0xf]
    %v68 = vld [vmem:[#allocation3 + $0x60] sm:$0xf]
    %v69 = vld [vmem:[#allocation3 + $0x64] sm:$0xf]
    %v70 = vld [vmem:[#allocation3 + $0x68] sm:$0xf]
    %v71 = vld [vmem:[#allocation3 + $0x6c] sm:$0xf]
    %v72 = vld [vmem:[#allocation3 + $0x70] sm:$0xf]
    %v73 = vld [vmem:[#allocation3 + $0x74] sm:$0xf]
    %v74 = vld [vmem:[#allocation3 + $0x78] sm:$0xf]
    %v75 = vld [vmem:[#allocation3 + $0x7c] sm:$0xf]
    %v76 = vld [vmem:[#allocation3 + $0x80] sm:$0xf]
    %v77 = vld [vmem:[#allocation3 + $0x84] sm:$0xf]
    %v78 = vld [vmem:[#allocation3 + $0x88] sm:$0xf]
    %v79 = vld [vmem:[#allocation3 + $0x8c] sm:$0xf]
    %v80 = vld [vmem:[#allocation3 + $0x90] sm:$0xf]
    %v81 = vld [vmem:[#allocation3 + $0x94] sm:$0xf]
    %v82 = vld [vmem:[#allocation3 + $0x98] sm:$0xf]
    %v83 = vld [vmem:[#allocation3 + $0x9c] sm:$0xf]
    %v84 = vld [vmem:[#allocation3 + $0xa0] sm:$0xf]
    %v85 = vld [vmem:[#allocation3 + $0xa4] sm:$0xf]
    %v86 = vld [vmem:[#allocation3 + $0xa8] sm:$0xf]
    %v87 = vld [vmem:[#allocation3 + $0xac] sm:$0xf]
    %v88 = vld [vmem:[#allocation3 + $0xb0] sm:$0xf]
    %v89 = vld [vmem:[#allocation3 + $0xb4] sm:$0xf]
    %v90 = vld [vmem:[#allocation3 + $0xb8] sm:$0xf]
    %v91 = vld [vmem:[#allocation3 + $0xbc] sm:$0xf]
    %v92 = vld [vmem:[#allocation3 + $0xc0] sm:$0xf]
    %v93 = vld [vmem:[#allocation3 + $0xc4] sm:$0xf]
    %v94 = vld [vmem:[#allocation6] sm:$0xf]
    %v95 = vld [vmem:[#allocation6 + $0x4] sm:$0xf]
    %v96 = vld [vmem:[#allocation6 + $0x8] sm:$0xf]
    %v97 = vld [vmem:[#allocation6 + $0xc] sm:$0xf]
    %v98 = vld [vmem:[#allocation6 + $0x10] sm:$0xf]
    %v99 = vld [vmem:[#allocation6 + $0x14] sm:$0xf]
    %v100 = vld [vmem:[#allocation6 + $0x18] sm:$0xf]
    %v101 = vld [vmem:[#allocation6 + $0x1c] sm:$0xf]
    %v102 = vld [vmem:[#allocation6 + $0x20] sm:$0xf]
    %v103 = vld [vmem:[#allocation6 + $0x24] sm:$0xf]
    %v104 = vld [vmem:[#allocation6 + $0x28] sm:$0xf]
    %v105 = vld [vmem:[#allocation6 + $0x2c] sm:$0xf]
    %v106 = vld [vmem:[#allocation6 + $0x30] sm:$0xf]
    %v107 = vld [vmem:[#allocation6 + $0x34] sm:$0xf]
    %v108 = vld [vmem:[#allocation6 + $0x38] sm:$0xf]
    %v109 = vld [vmem:[#allocation6 + $0x3c] sm:$0xf]
    %v160 = vunpack.c.l.b16 %v44
    %v161 = vunpack.c.l.b16 %v45
    %v162 = vunpack.c.l.b16 %v46
    %v163 = vunpack.c.l.b16 %v47
    %v164 = vunpack.c.l.b16 %v48
    %v165 = vunpack.c.l.b16 %v49
    %v166 = vunpack.c.l.b16 %v50
    %v167 = vunpack.c.l.b16 %v51
    %v168 = vunpack.c.l.b16 %v52
    %v169 = vunpack.c.l.b16 %v53
    %v170 = vunpack.c.l.b16 %v54
    %v171 = vunpack.c.l.b16 %v55
    %v172 = vunpack.c.l.b16 %v56
    %v173 = vunpack.c.l.b16 %v57
    %v174 = vunpack.c.l.b16 %v58
    %v175 = vunpack.c.l.b16 %v59
    %v176 = vunpack.c.l.b16 %v60
    %v177 = vunpack.c.l.b16 %v61
    %v178 = vunpack.c.l.b16 %v62
    %v179 = vunpack.c.l.b16 %v63
    %v180 = vunpack.c.l.b16 %v64
    %v181 = vunpack.c.l.b16 %v65
    %v182 = vunpack.c.l.b16 %v66
    %v183 = vunpack.c.l.b16 %v67
    %v184 = vunpack.c.l.b16 %v68
    %v185 = vunpack.c.l.b16 %v69
    %v186 = vunpack.c.l.b16 %v70
    %v187 = vunpack.c.l.b16 %v71
    %v188 = vunpack.c.l.b16 %v72
    %v189 = vunpack.c.l.b16 %v73
    %v190 = vunpack.c.l.b16 %v74
    %v191 = vunpack.c.l.b16 %v75
    %v192 = vunpack.c.l.b16 %v76
    %v193 = vunpack.c.l.b16 %v77
    %v194 = vunpack.c.l.b16 %v78
    %v195 = vunpack.c.l.b16 %v79
    %v196 = vunpack.c.l.b16 %v80
    %v197 = vunpack.c.l.b16 %v81
    %v198 = vunpack.c.l.b16 %v82
    %v199 = vunpack.c.l.b16 %v83
    %v200 = vunpack.c.l.b16 %v84
    %v201 = vunpack.c.l.b16 %v85
    %v202 = vunpack.c.l.b16 %v86
    %v203 = vunpack.c.l.b16 %v87
    %v204 = vunpack.c.l.b16 %v88
    %v205 = vunpack.c.l.b16 %v89
    %v206 = vunpack.c.l.b16 %v90
    %v207 = vunpack.c.l.b16 %v91
    %v208 = vunpack.c.l.b16 %v92
    %v209 = vunpack.c.l.b16 %v93
    %v210 = vpack.c.b16 %v161, %v160
    %v211 = vpack.c.b16 %v163, %v162
    %v212 = vpack.c.b16 %v165, %v164
    %v213 = vpack.c.b16 %v167, %v166
    %v214 = vpack.c.b16 %v169, %v168
    %v215 = vpack.c.b16 %v171, %v170
    %v216 = vpack.c.b16 %v173, %v172
    %v217 = vpack.c.b16 %v175, %v174
    %v218 = vpack.c.b16 %v177, %v176
    %v219 = vpack.c.b16 %v179, %v178
    %v220 = vpack.c.b16 %v181, %v180
    %v221 = vpack.c.b16 %v183, %v182
    %v222 = vpack.c.b16 %v185, %v184
    %v223 = vpack.c.b16 %v187, %v186
    %v224 = vpack.c.b16 %v189, %v188
    %v225 = vpack.c.b16 %v191, %v190
    %v226 = vpack.c.b16 %v193, %v192
    %v227 = vpack.c.b16 %v195, %v194
    %v228 = vpack.c.b16 %v197, %v196
    %v229 = vpack.c.b16 %v199, %v198
    %v230 = vpack.c.b16 %v201, %v200
    %v231 = vpack.c.b16 %v203, %v202
    %v232 = vpack.c.b16 %v205, %v204
    %v233 = vpack.c.b16 %v207, %v206
    %v234 = vpack.c.b16 %v209, %v208
    %v276 = vunpack.c.l.b16 %v94
    %v277 = vunpack.c.l.b16 %v95
    %v278 = vunpack.c.l.b16 %v96
    %v279 = vunpack.c.l.b16 %v97
    %v280 = vunpack.c.l.b16 %v98
    %v281 = vunpack.c.l.b16 %v99
    %v282 = vunpack.c.l.b16 %v100
    %v283 = vunpack.c.l.b16 %v101
    %v284 = vunpack.c.l.b16 %v102
    %v285 = vunpack.c.l.b16 %v103
    %v286 = vunpack.c.l.b16 %v104
    %v287 = vunpack.c.l.b16 %v105
    %v288 = vunpack.c.l.b16 %v106
    %v289 = vunpack.c.l.b16 %v107
    %v290 = vunpack.c.l.b16 %v108
    %v291 = vunpack.c.l.b16 %v109
    %v292 = vpack.c.b16 %v277, %v276
    %v293 = vpack.c.b16 %v279, %v278
    %v294 = vpack.c.b16 %v281, %v280
    %v295 = vpack.c.b16 %v283, %v282
    %v296 = vpack.c.b16 %v285, %v284
    %v297 = vpack.c.b16 %v287, %v286
    %v298 = vpack.c.b16 %v289, %v288
    %v299 = vpack.c.b16 %v291, %v290
    %308 = vmatprep.subr.bf16.mxu0 0
    %309 = vmatpush1.bf16.msra.mxu0 %v299
    %310 = vmatprep.subr.bf16.mxu0 0
    %311 = vmatpush1.bf16.msra.mxu0 %v298
    %312 = vmatprep.subr.bf16.mxu0 0
    %313 = vmatpush1.bf16.msra.mxu0 %v297
    %314 = vmatprep.subr.bf16.mxu0 0
    %315 = vmatpush1.bf16.msra.mxu0 %v296
    %316 = vmatprep.subr.bf16.mxu0 0
    %317 = vmatpush1.bf16.msra.mxu0 %v295
    %318 = vmatprep.subr.bf16.mxu0 0
    %319 = vmatpush1.bf16.msra.mxu0 %v294
    %320 = vmatprep.subr.bf16.mxu0 0
    %321 = vmatpush1.bf16.msra.mxu0 %v293
    %322 = vmatprep.subr.bf16.mxu0 0
    %323 = vmatpush1.bf16.msra.mxu0 %v292
    %324 = vmatprep.subr.bf16.mxu0 0
    %325 = vmatpush2.bf16.msra.mxu0 0
    %326 = vmatprep.subr.bf16.mxu0 0
    %327 = vmatpush2.bf16.msra.mxu0 0
    %328 = vmatprep.subr.bf16.mxu0 0
    %329 = vmatpush2.bf16.msra.mxu0 0
    %330 = vmatprep.subr.bf16.mxu0 0
    %331 = vmatpush2.bf16.msra.mxu0 0
    %332 = vmatprep.subr.bf16.mxu0 0
    %333 = vmatpush2.bf16.msra.mxu0 0
    %334 = vmatprep.subr.bf16.mxu0 0
    %335 = vmatpush2.bf16.msra.mxu0 0
    %336 = vmatprep.subr.bf16.mxu0 0
    %337 = vmatpush2.bf16.msra.mxu0 0
    %338 = vmatprep.subr.bf16.mxu0 0
    %339 = vmatpush2.bf16.msra.mxu0 0
    %340 = vmatprep.mubr.bf16.mxu0 0
    %341 = vmatmul.mubr.bf16.gmra.mxu0 %v210
    %v342 = vpop.f32.mrf.mxu0
    %v343 = vadd.f32 0.0, %v342
    %v344 = vpop.f32.mrf.mxu0
    %v345 = vpop.f32.mrf.mxu0
    %v346 = vadd.f32 0.0, %v345
    %v347 = vpop.f32.mrf.mxu0
    %348 = vmatprep.mubr.bf16.mxu0 0
    %349 = vmatmul.mubr.bf16.gmra.mxu0 %v211
    %v350 = vpop.f32.mrf.mxu0
    %v351 = vadd.f32 0.0, %v350
    %v352 = vpop.f32.mrf.mxu0
    %v353 = vpop.f32.mrf.mxu0
    %v354 = vadd.f32 0.0, %v353
    %v355 = vpop.f32.mrf.mxu0
    %356 = vmatprep.mubr.bf16.mxu0 0
    %357 = vmatmul.mubr.bf16.gmra.mxu0 %v212
    %v358 = vpop.f32.mrf.mxu0
    %v359 = vadd.f32 0.0, %v358
    %v360 = vpop.f32.mrf.mxu0
    %v361 = vpop.f32.mrf.mxu0
    %v362 = vadd.f32 0.0, %v361
    %v363 = vpop.f32.mrf.mxu0
    %364 = vmatprep.mubr.bf16.mxu0 0
    %365 = vmatmul.mubr.bf16.gmra.mxu0 %v213
    %v366 = vpop.f32.mrf.mxu0
    %v367 = vadd.f32 0.0, %v366
    %v368 = vpop.f32.mrf.mxu0
    %v369 = vpop.f32.mrf.mxu0
    %v370 = vadd.f32 0.0, %v369
    %v371 = vpop.f32.mrf.mxu0
    %372 = vmatprep.mubr.bf16.mxu0 0
    %373 = vmatmul.mubr.bf16.gmra.mxu0 %v214
    %v374 = vpop.f32.mrf.mxu0
    %v375 = vadd.f32 0.0, %v374
    %v376 = vpop.f32.mrf.mxu0
    %v377 = vpop.f32.mrf.mxu0
    %v378 = vadd.f32 0.0, %v377
    %v379 = vpop.f32.mrf.mxu0
    %380 = vmatprep.mubr.bf16.mxu0 0
    %381 = vmatmul.mubr.bf16.gmra.mxu0 %v215
    %v382 = vpop.f32.mrf.mxu0
    %v383 = vadd.f32 0.0, %v382
    %v384 = vpop.f32.mrf.mxu0
    %v385 = vpop.f32.mrf.mxu0
    %v386 = vadd.f32 0.0, %v385
    %v387 = vpop.f32.mrf.mxu0
    %388 = vmatprep.mubr.bf16.mxu0 0
    %389 = vmatmul.mubr.bf16.gmra.mxu0 %v216
    %v390 = vpop.f32.mrf.mxu0
    %v391 = vadd.f32 0.0, %v390
    %v392 = vpop.f32.mrf.mxu0
    %v393 = vpop.f32.mrf.mxu0
    %v394 = vadd.f32 0.0, %v393
    %v395 = vpop.f32.mrf.mxu0
    %396 = vmatprep.mubr.bf16.mxu0 0
    %397 = vmatmul.mubr.bf16.gmra.mxu0 %v217
    %v398 = vpop.f32.mrf.mxu0
    %v399 = vadd.f32 0.0, %v398
    %v400 = vpop.f32.mrf.mxu0
    %v401 = vpop.f32.mrf.mxu0
    %v402 = vadd.f32 0.0, %v401
    %v403 = vpop.f32.mrf.mxu0
    %404 = vmatprep.mubr.bf16.mxu0 0
    %405 = vmatmul.mubr.bf16.gmra.mxu0 %v218
    %v406 = vpop.f32.mrf.mxu0
    %v407 = vadd.f32 0.0, %v406
    %v408 = vpop.f32.mrf.mxu0
    %v409 = vpop.f32.mrf.mxu0
    %v410 = vadd.f32 0.0, %v409
    %v411 = vpop.f32.mrf.mxu0
    %412 = vmatprep.mubr.bf16.mxu0 0
    %413 = vmatmul.mubr.bf16.gmra.mxu0 %v219
    %v414 = vpop.f32.mrf.mxu0
    %v415 = vadd.f32 0.0, %v414
    %v416 = vpop.f32.mrf.mxu0
    %v417 = vpop.f32.mrf.mxu0
    %v418 = vadd.f32 0.0, %v417
    %v419 = vpop.f32.mrf.mxu0
    %420 = vmatprep.mubr.bf16.mxu0 0
    %421 = vmatmul.mubr.bf16.gmra.mxu0 %v220
    %v422 = vpop.f32.mrf.mxu0
    %v423 = vadd.f32 0.0, %v422
    %v424 = vpop.f32.mrf.mxu0
    %v425 = vpop.f32.mrf.mxu0
    %v426 = vadd.f32 0.0, %v425
    %v427 = vpop.f32.mrf.mxu0
    %428 = vmatprep.mubr.bf16.mxu0 0
    %429 = vmatmul.mubr.bf16.gmra.mxu0 %v221
    %v430 = vpop.f32.mrf.mxu0
    %v431 = vadd.f32 0.0, %v430
    %v432 = vpop.f32.mrf.mxu0
    %v433 = vpop.f32.mrf.mxu0
    %v434 = vadd.f32 0.0, %v433
    %v435 = vpop.f32.mrf.mxu0
    %436 = vmatprep.mubr.bf16.mxu0 0
    %437 = vmatmul.mubr.bf16.gmra.mxu0 %v222
    %v438 = vpop.f32.mrf.mxu0
    %v439 = vadd.f32 0.0, %v438
    %v440 = vpop.f32.mrf.mxu0
    %v441 = vpop.f32.mrf.mxu0
    %v442 = vadd.f32 0.0, %v441
    %v443 = vpop.f32.mrf.mxu0
    %444 = vmatprep.mubr.bf16.mxu0 0
    %445 = vmatmul.mubr.bf16.gmra.mxu0 %v223
    %v446 = vpop.f32.mrf.mxu0
    %v447 = vadd.f32 0.0, %v446
    %v448 = vpop.f32.mrf.mxu0
    %v449 = vpop.f32.mrf.mxu0
    %v450 = vadd.f32 0.0, %v449
    %v451 = vpop.f32.mrf.mxu0
    %452 = vmatprep.mubr.bf16.mxu0 0
    %453 = vmatmul.mubr.bf16.gmra.mxu0 %v224
    %v454 = vpop.f32.mrf.mxu0
    %v455 = vadd.f32 0.0, %v454
    %v456 = vpop.f32.mrf.mxu0
    %v457 = vpop.f32.mrf.mxu0
    %v458 = vadd.f32 0.0, %v457
    %v459 = vpop.f32.mrf.mxu0
    %460 = vmatprep.mubr.bf16.mxu0 0
    %461 = vmatmul.mubr.bf16.gmra.mxu0 %v225
    %v462 = vpop.f32.mrf.mxu0
    %v463 = vadd.f32 0.0, %v462
    %v464 = vpop.f32.mrf.mxu0
    %v465 = vpop.f32.mrf.mxu0
    %v466 = vadd.f32 0.0, %v465
    %v467 = vpop.f32.mrf.mxu0
    %468 = vmatprep.mubr.bf16.mxu0 0
    %469 = vmatmul.mubr.bf16.gmra.mxu0 %v226
    %v470 = vpop.f32.mrf.mxu0
    %v471 = vadd.f32 0.0, %v470
    %v472 = vpop.f32.mrf.mxu0
    %v473 = vpop.f32.mrf.mxu0
    %v474 = vadd.f32 0.0, %v473
    %v475 = vpop.f32.mrf.mxu0
    %476 = vmatprep.mubr.bf16.mxu0 0
    %477 = vmatmul.mubr.bf16.gmra.mxu0 %v227
    %v478 = vpop.f32.mrf.mxu0
    %v479 = vadd.f32 0.0, %v478
    %v480 = vpop.f32.mrf.mxu0
    %v481 = vpop.f32.mrf.mxu0
    %v482 = vadd.f32 0.0, %v481
    %v483 = vpop.f32.mrf.mxu0
    %484 = vmatprep.mubr.bf16.mxu0 0
    %485 = vmatmul.mubr.bf16.gmra.mxu0 %v228
    %v486 = vpop.f32.mrf.mxu0
    %v487 = vadd.f32 0.0, %v486
    %v488 = vpop.f32.mrf.mxu0
    %v489 = vpop.f32.mrf.mxu0
    %v490 = vadd.f32 0.0, %v489
    %v491 = vpop.f32.mrf.mxu0
    %492 = vmatprep.mubr.bf16.mxu0 0
    %493 = vmatmul.mubr.bf16.gmra.mxu0 %v229
    %v494 = vpop.f32.mrf.mxu0
    %v495 = vadd.f32 0.0, %v494
    %v496 = vpop.f32.mrf.mxu0
    %v497 = vpop.f32.mrf.mxu0
    %v498 = vadd.f32 0.0, %v497
    %v499 = vpop.f32.mrf.mxu0
    %500 = vmatprep.mubr.bf16.mxu0 0
    %501 = vmatmul.mubr.bf16.gmra.mxu0 %v230
    %v502 = vpop.f32.mrf.mxu0
    %v503 = vadd.f32 0.0, %v502
    %v504 = vpop.f32.mrf.mxu0
    %v505 = vpop.f32.mrf.mxu0
    %v506 = vadd.f32 0.0, %v505
    %v507 = vpop.f32.mrf.mxu0
    %508 = vmatprep.mubr.bf16.mxu0 0
    %509 = vmatmul.mubr.bf16.gmra.mxu0 %v231
    %v510 = vpop.f32.mrf.mxu0
    %v511 = vadd.f32 0.0, %v510
    %v512 = vpop.f32.mrf.mxu0
    %v513 = vpop.f32.mrf.mxu0
    %v514 = vadd.f32 0.0, %v513
    %v515 = vpop.f32.mrf.mxu0
    %516 = vmatprep.mubr.bf16.mxu0 0
    %517 = vmatmul.mubr.bf16.gmra.mxu0 %v232
    %v518 = vpop.f32.mrf.mxu0
    %v519 = vadd.f32 0.0, %v518
    %v520 = vpop.f32.mrf.mxu0
    %v521 = vpop.f32.mrf.mxu0
    %v522 = vadd.f32 0.0, %v521
    %v523 = vpop.f32.mrf.mxu0
    %524 = vmatprep.mubr.bf16.mxu0 0
    %525 = vmatmul.mubr.bf16.gmra.mxu0 %v233
    %v526 = vpop.f32.mrf.mxu0
    %v527 = vadd.f32 0.0, %v526
    %v528 = vpop.f32.mrf.mxu0
    %v529 = vpop.f32.mrf.mxu0
    %v530 = vadd.f32 0.0, %v529
    %v531 = vpop.f32.mrf.mxu0
    %532 = vmatprep.mubr.bf16.mxu0 0
    %533 = vmatmul.mubr.bf16.gmra.mxu0 %v234
    %v534 = vpop.f32.mrf.mxu0
    %v535 = vadd.f32 0.0, %v534
    %v536 = vpop.f32.mrf.mxu0
    %v537 = vpop.f32.mrf.mxu0
    %v538 = vadd.f32 0.0, %v537
    %v539 = vpop.f32.mrf.mxu0
    %540 = vdwg.mxu0
    %p541 = scmp.eq.s32.totalorder 0, 0
    // Predicated region
    $region22: #{tpu_custom_call.1} parent=1 // pred_check
      %p542 = pneg %p541
    $region23: #{tpu_custom_call.1} parent=1 // pred_check_branch
      %544 = sbr.rel (%p542) target = $region25
    $region24: #{tpu_custom_call.1} parent=1 // pred_region
      %545 = vst [vmem:[#allocation2] sm:$0xff] %v343
      %546 = vst [vmem:[#allocation2 + $0x8] sm:$0xff] %v346
      %547 = vst [vmem:[#allocation2 + $0x10] sm:$0xff] %v351
      %548 = vst [vmem:[#allocation2 + $0x18] sm:$0xff] %v354
      %549 = vst [vmem:[#allocation2 + $0x20] sm:$0xff] %v359
      %550 = vst [vmem:[#allocation2 + $0x28] sm:$0xff] %v362
      %551 = vst [vmem:[#allocation2 + $0x30] sm:$0xff] %v367
      %552 = vst [vmem:[#allocation2 + $0x38] sm:$0xff] %v370
      %553 = vst [vmem:[#allocation2 + $0x40] sm:$0xff] %v375
      %554 = vst [vmem:[#allocation2 + $0x48] sm:$0xff] %v378
      %555 = vst [vmem:[#allocation2 + $0x50] sm:$0xff] %v383
      %556 = vst [vmem:[#allocation2 + $0x58] sm:$0xff] %v386
      %557 = vst [vmem:[#allocation2 + $0x60] sm:$0xff] %v391
      %558 = vst [vmem:[#allocation2 + $0x68] sm:$0xff] %v394
      %559 = vst [vmem:[#allocation2 + $0x70] sm:$0xff] %v399
      %560 = vst [vmem:[#allocation2 + $0x78] sm:$0xff] %v402
      %561 = vst [vmem:[#allocation2 + $0x80] sm:$0xff] %v407
      %562 = vst [vmem:[#allocation2 + $0x88] sm:$0xff] %v410
      %563 = vst [vmem:[#allocation2 + $0x90] sm:$0xff] %v415
      %564 = vst [vmem:[#allocation2 + $0x98] sm:$0xff] %v418
      %565 = vst [vmem:[#allocation2 + $0xa0] sm:$0xff] %v423
      %566 = vst [vmem:[#allocation2 + $0xa8] sm:$0xff] %v426
      %567 = vst [vmem:[#allocation2 + $0xb0] sm:$0xff] %v431
      %568 = vst [vmem:[#allocation2 + $0xb8] sm:$0xff] %v434
      %569 = vst [vmem:[#allocation2 + $0xc0] sm:$0xff] %v439
      %570 = vst [vmem:[#allocation2 + $0xc8] sm:$0xff] %v442
      %571 = vst [vmem:[#allocation2 + $0xd0] sm:$0xff] %v447
      %572 = vst [vmem:[#allocation2 + $0xd8] sm:$0xff] %v450
      %573 = vst [vmem:[#allocation2 + $0xe0] sm:$0xff] %v455
      %574 = vst [vmem:[#allocation2 + $0xe8] sm:$0xff] %v458
      %575 = vst [vmem:[#allocation2 + $0xf0] sm:$0xff] %v463
      %576 = vst [vmem:[#allocation2 + $0xf8] sm:$0xff] %v466
      %577 = vst [vmem:[#allocation2 + $0x100] sm:$0xff] %v471
      %578 = vst [vmem:[#allocation2 + $0x108] sm:$0xff] %v474
      %579 = vst [vmem:[#allocation2 + $0x110] sm:$0xff] %v479
      %580 = vst [vmem:[#allocation2 + $0x118] sm:$0xff] %v482
      %581 = vst [vmem:[#allocation2 + $0x120] sm:$0xff] %v487
      %582 = vst [vmem:[#allocation2 + $0x128] sm:$0xff] %v490
      %583 = vst [vmem:[#allocation2 + $0x130] sm:$0xff] %v495
      %584 = vst [vmem:[#allocation2 + $0x138] sm:$0xff] %v498
      %585 = vst [vmem:[#allocation2 + $0x140] sm:$0xff] %v503
      %586 = vst [vmem:[#allocation2 + $0x148] sm:$0xff] %v506
      %587 = vst [vmem:[#allocation2 + $0x150] sm:$0xff] %v511
      %588 = vst [vmem:[#allocation2 + $0x158] sm:$0xff] %v514
      %589 = vst [vmem:[#allocation2 + $0x160] sm:$0xff] %v519
      %590 = vst [vmem:[#allocation2 + $0x168] sm:$0xff] %v522
      %591 = vst [vmem:[#allocation2 + $0x170] sm:$0xff] %v527
      %592 = vst [vmem:[#allocation2 + $0x178] sm:$0xff] %v530
      %593 = vst [vmem:[#allocation2 + $0x180] sm:$0xff] %v535
      %594 = vst [vmem:[#allocation2 + $0x188] sm:$0xff] %v538
    $region25: #{tpu_custom_call.1} parent=1 // pred_fallthru
      _
    %p595 = scmp.gt.s32.totalorder 0, 0
    // Predicated region
    $region26: #{tpu_custom_call.1} parent=1 // pred_check
      %p596 = pneg %p595
    $region27: #{tpu_custom_call.1} parent=1 // pred_check_branch
      %598 = sbr.rel (%p596) target = $region29
    $region28: #{tpu_custom_call.1} parent=1 // pred_region
      %v599 = vld [vmem:[#allocation2] sm:$0xff]
      %v600 = vld [vmem:[#allocation2 + $0x8] sm:$0xff]
      %v601 = vld [vmem:[#allocation2 + $0x10] sm:$0xff]
      %v602 = vld [vmem:[#allocation2 + $0x18] sm:$0xff]
      %v603 = vld [vmem:[#allocation2 + $0x20] sm:$0xff]
      %v604 = vld [vmem:[#allocation2 + $0x28] sm:$0xff]
      %v605 = vld [vmem:[#allocation2 + $0x30] sm:$0xff]
      %v606 = vld [vmem:[#allocation2 + $0x38] sm:$0xff]
      %v607 = vld [vmem:[#allocation2 + $0x40] sm:$0xff]
      %v608 = vld [vmem:[#allocation2 + $0x48] sm:$0xff]
      %v609 = vld [vmem:[#allocation2 + $0x50] sm:$0xff]
      %v610 = vld [vmem:[#allocation2 + $0x58] sm:$0xff]
      %v611 = vld [vmem:[#allocation2 + $0x60] sm:$0xff]
      %v612 = vld [vmem:[#allocation2 + $0x68] sm:$0xff]
      %v613 = vld [vmem:[#allocation2 + $0x70] sm:$0xff]
      %v614 = vld [vmem:[#allocation2 + $0x78] sm:$0xff]
      %v615 = vld [vmem:[#allocation2 + $0x80] sm:$0xff]
      %v616 = vld [vmem:[#allocation2 + $0x88] sm:$0xff]
      %v617 = vld [vmem:[#allocation2 + $0x90] sm:$0xff]
      %v618 = vld [vmem:[#allocation2 + $0x98] sm:$0xff]
      %v619 = vld [vmem:[#allocation2 + $0xa0] sm:$0xff]
      %v620 = vld [vmem:[#allocation2 + $0xa8] sm:$0xff]
      %v621 = vld [vmem:[#allocation2 + $0xb0] sm:$0xff]
      %v622 = vld [vmem:[#allocation2 + $0xb8] sm:$0xff]
      %v623 = vld [vmem:[#allocation2 + $0xc0] sm:$0xff]
      %v624 = vld [vmem:[#allocation2 + $0xc8] sm:$0xff]
      %v625 = vld [vmem:[#allocation2 + $0xd0] sm:$0xff]
      %v626 = vld [vmem:[#allocation2 + $0xd8] sm:$0xff]
      %v627 = vld [vmem:[#allocation2 + $0xe0] sm:$0xff]
      %v628 = vld [vmem:[#allocation2 + $0xe8] sm:$0xff]
      %v629 = vld [vmem:[#allocation2 + $0xf0] sm:$0xff]
      %v630 = vld [vmem:[#allocation2 + $0xf8] sm:$0xff]
      %v631 = vld [vmem:[#allocation2 + $0x100] sm:$0xff]
      %v632 = vld [vmem:[#allocation2 + $0x108] sm:$0xff]
      %v633 = vld [vmem:[#allocation2 + $0x110] sm:$0xff]
      %v634 = vld [vmem:[#allocation2 + $0x118] sm:$0xff]
      %v635 = vld [vmem:[#allocation2 + $0x120] sm:$0xff]
      %v636 = vld [vmem:[#allocation2 + $0x128] sm:$0xff]
      %v637 = vld [vmem:[#allocation2 + $0x130] sm:$0xff]
      %v638 = vld [vmem:[#allocation2 + $0x138] sm:$0xff]
      %v639 = vld [vmem:[#allocation2 + $0x140] sm:$0xff]
      %v640 = vld [vmem:[#allocation2 + $0x148] sm:$0xff]
      %v641 = vld [vmem:[#allocation2 + $0x150] sm:$0xff]
      %v642 = vld [vmem:[#allocation2 + $0x158] sm:$0xff]
      %v643 = vld [vmem:[#allocation2 + $0x160] sm:$0xff]
      %v644 = vld [vmem:[#allocation2 + $0x168] sm:$0xff]
      %v645 = vld [vmem:[#allocation2 + $0x170] sm:$0xff]
      %v646 = vld [vmem:[#allocation2 + $0x178] sm:$0xff]
      %v647 = vld [vmem:[#allocation2 + $0x180] sm:$0xff]
      %v648 = vld [vmem:[#allocation2 + $0x188] sm:$0xff]
      %v649 = vadd.f32 %v599, %v343
      %v650 = vadd.f32 %v600, %v346
      %v651 = vadd.f32 %v601, %v351
      %v652 = vadd.f32 %v602, %v354
      %v653 = vadd.f32 %v603, %v359
      %v654 = vadd.f32 %v604, %v362
      %v655 = vadd.f32 %v605, %v367
      %v656 = vadd.f32 %v606, %v370
      %v657 = vadd.f32 %v607, %v375
      %v658 = vadd.f32 %v608, %v378
      %v659 = vadd.f32 %v609, %v383
      %v660 = vadd.f32 %v610, %v386
      %v661 = vadd.f32 %v611, %v391
      %v662 = vadd.f32 %v612, %v394
      %v663 = vadd.f32 %v613, %v399
      %v664 = vadd.f32 %v614, %v402
      %v665 = vadd.f32 %v615, %v407
      %v666 = vadd.f32 %v616, %v410
      %v667 = vadd.f32 %v617, %v415
      %v668 = vadd.f32 %v618, %v418
      %v669 = vadd.f32 %v619, %v423
      %v670 = vadd.f32 %v620, %v426
      %v671 = vadd.f32 %v621, %v431
      %v672 = vadd.f32 %v622, %v434
      %v673 = vadd.f32 %v623, %v439
      %v674 = vadd.f32 %v624, %v442
      %v675 = vadd.f32 %v625, %v447
      %v676 = vadd.f32 %v626, %v450
      %v677 = vadd.f32 %v627, %v455
      %v678 = vadd.f32 %v628, %v458
      %v679 = vadd.f32 %v629, %v463
      %v680 = vadd.f32 %v630, %v466
      %v681 = vadd.f32 %v631, %v471
      %v682 = vadd.f32 %v632, %v474
      %v683 = vadd.f32 %v633, %v479
      %v684 = vadd.f32 %v634, %v482
      %v685 = vadd.f32 %v635, %v487
      %v686 = vadd.f32 %v636, %v490
      %v687 = vadd.f32 %v637, %v495
      %v688 = vadd.f32 %v638, %v498
      %v689 = vadd.f32 %v639, %v503
      %v690 = vadd.f32 %v640, %v506
      %v691 = vadd.f32 %v641, %v511
      %v692 = vadd.f32 %v642, %v514
      %v693 = vadd.f32 %v643, %v519
      %v694 = vadd.f32 %v644, %v522
      %v695 = vadd.f32 %v645, %v527
      %v696 = vadd.f32 %v646, %v530
      %v697 = vadd.f32 %v647, %v535
      %v698 = vadd.f32 %v648, %v538
      %699 = vst [vmem:[#allocation2] sm:$0xff] %v649
      %700 = vst [vmem:[#allocation2 + $0x8] sm:$0xff] %v650
      %701 = vst [vmem:[#allocation2 + $0x10] sm:$0xff] %v651
      %702 = vst [vmem:[#allocation2 + $0x18] sm:$0xff] %v652
      %703 = vst [vmem:[#allocation2 + $0x20] sm:$0xff] %v653
      %704 = vst [vmem:[#allocation2 + $0x28] sm:$0xff] %v654
      %705 = vst [vmem:[#allocation2 + $0x30] sm:$0xff] %v655
      %706 = vst [vmem:[#allocation2 + $0x38] sm:$0xff] %v656
      %707 = vst [vmem:[#allocation2 + $0x40] sm:$0xff] %v657
      %708 = vst [vmem:[#allocation2 + $0x48] sm:$0xff] %v658
      %709 = vst [vmem:[#allocation2 + $0x50] sm:$0xff] %v659
      %710 = vst [vmem:[#allocation2 + $0x58] sm:$0xff] %v660
      %711 = vst [vmem:[#allocation2 + $0x60] sm:$0xff] %v661
      %712 = vst [vmem:[#allocation2 + $0x68] sm:$0xff] %v662
      %713 = vst [vmem:[#allocation2 + $0x70] sm:$0xff] %v663
      %714 = vst [vmem:[#allocation2 + $0x78] sm:$0xff] %v664
      %715 = vst [vmem:[#allocation2 + $0x80] sm:$0xff] %v665
      %716 = vst [vmem:[#allocation2 + $0x88] sm:$0xff] %v666
      %717 = vst [vmem:[#allocation2 + $0x90] sm:$0xff] %v667
      %718 = vst [vmem:[#allocation2 + $0x98] sm:$0xff] %v668
      %719 = vst [vmem:[#allocation2 + $0xa0] sm:$0xff] %v669
      %720 = vst [vmem:[#allocation2 + $0xa8] sm:$0xff] %v670
      %721 = vst [vmem:[#allocation2 + $0xb0] sm:$0xff] %v671
      %722 = vst [vmem:[#allocation2 + $0xb8] sm:$0xff] %v672
      %723 = vst [vmem:[#allocation2 + $0xc0] sm:$0xff] %v673
      %724 = vst [vmem:[#allocation2 + $0xc8] sm:$0xff] %v674
      %725 = vst [vmem:[#allocation2 + $0xd0] sm:$0xff] %v675
      %726 = vst [vmem:[#allocation2 + $0xd8] sm:$0xff] %v676
      %727 = vst [vmem:[#allocation2 + $0xe0] sm:$0xff] %v677
      %728 = vst [vmem:[#allocation2 + $0xe8] sm:$0xff] %v678
      %729 = vst [vmem:[#allocation2 + $0xf0] sm:$0xff] %v679
      %730 = vst [vmem:[#allocation2 + $0xf8] sm:$0xff] %v680
      %731 = vst [vmem:[#allocation2 + $0x100] sm:$0xff] %v681
      %732 = vst [vmem:[#allocation2 + $0x108] sm:$0xff] %v682
      %733 = vst [vmem:[#allocation2 + $0x110] sm:$0xff] %v683
      %734 = vst [vmem:[#allocation2 + $0x118] sm:$0xff] %v684
      %735 = vst [vmem:[#allocation2 + $0x120] sm:$0xff] %v685
      %736 = vst [vmem:[#allocation2 + $0x128] sm:$0xff] %v686
      %737 = vst [vmem:[#allocation2 + $0x130] sm:$0xff] %v687
      %738 = vst [vmem:[#allocation2 + $0x138] sm:$0xff] %v688
      %739 = vst [vmem:[#allocation2 + $0x140] sm:$0xff] %v689
      %740 = vst [vmem:[#allocation2 + $0x148] sm:$0xff] %v690
      %741 = vst [vmem:[#allocation2 + $0x150] sm:$0xff] %v691
      %742 = vst [vmem:[#allocation2 + $0x158] sm:$0xff] %v692
      %743 = vst [vmem:[#allocation2 + $0x160] sm:$0xff] %v693
      %744 = vst [vmem:[#allocation2 + $0x168] sm:$0xff] %v694
      %745 = vst [vmem:[#allocation2 + $0x170] sm:$0xff] %v695
      %746 = vst [vmem:[#allocation2 + $0x178] sm:$0xff] %v696
      %747 = vst [vmem:[#allocation2 + $0x180] sm:$0xff] %v697
      %748 = vst [vmem:[#allocation2 + $0x188] sm:$0xff] %v698
    $region29: #{tpu_custom_call.1} parent=1 // pred_fallthru
      _
    // Predicated region
    $region30: #{tpu_custom_call.1} parent=1 // pred_check
      %p749 = pneg %p541
    $region31: #{tpu_custom_call.1} parent=1 // pred_check_branch
      %751 = sbr.rel (%p749) target = $region33
    $region32: #{tpu_custom_call.1} parent=1 // pred_region
      %v752 = vld [vmem:[%s2] sm:$0x3]
      %v753 = vld [vmem:[#allocation2] sm:$0xff]
      %v754 = vld [vmem:[#allocation2 + $0x8] sm:$0xff]
      %v755 = vld [vmem:[#allocation2 + $0x10] sm:$0xff]
      %v756 = vld [vmem:[#allocation2 + $0x18] sm:$0xff]
      %v757 = vld [vmem:[#allocation2 + $0x20] sm:$0xff]
      %v758 = vld [vmem:[#allocation2 + $0x28] sm:$0xff]
      %v759 = vld [vmem:[#allocation2 + $0x30] sm:$0xff]
      %v760 = vld [vmem:[#allocation2 + $0x38] sm:$0xff]
      %v761 = vld [vmem:[#allocation2 + $0x40] sm:$0xff]
      %v762 = vld [vmem:[#allocation2 + $0x48] sm:$0xff]
      %v763 = vld [vmem:[#allocation2 + $0x50] sm:$0xff]
      %v764 = vld [vmem:[#allocation2 + $0x58] sm:$0xff]
      %v765 = vld [vmem:[#allocation2 + $0x60] sm:$0xff]
      %v766 = vld [vmem:[#allocation2 + $0x68] sm:$0xff]
      %v767 = vld [vmem:[#allocation2 + $0x70] sm:$0xff]
      %v768 = vld [vmem:[#allocation2 + $0x78] sm:$0xff]
      %v769 = vld [vmem:[#allocation2 + $0x80] sm:$0xff]
      %v770 = vld [vmem:[#allocation2 + $0x88] sm:$0xff]
      %v771 = vld [vmem:[#allocation2 + $0x90] sm:$0xff]
      %v772 = vld [vmem:[#allocation2 + $0x98] sm:$0xff]
      %v773 = vld [vmem:[#allocation2 + $0xa0] sm:$0xff]
      %v774 = vld [vmem:[#allocation2 + $0xa8] sm:$0xff]
      %v775 = vld [vmem:[#allocation2 + $0xb0] sm:$0xff]
      %v776 = vld [vmem:[#allocation2 + $0xb8] sm:$0xff]
      %v777 = vld [vmem:[#allocation2 + $0xc0] sm:$0xff]
      %v778 = vld [vmem:[#allocation2 + $0xc8] sm:$0xff]
      %v779 = vld [vmem:[#allocation2 + $0xd0] sm:$0xff]
      %v780 = vld [vmem:[#allocation2 + $0xd8] sm:$0xff]
      %v781 = vld [vmem:[#allocation2 + $0xe0] sm:$0xff]
      %v782 = vld [vmem:[#allocation2 + $0xe8] sm:$0xff]
      %v783 = vld [vmem:[#allocation2 + $0xf0] sm:$0xff]
      %v784 = vld [vmem:[#allocation2 + $0xf8] sm:$0xff]
      %v785 = vld [vmem:[#allocation2 + $0x100] sm:$0xff]
      %v786 = vld [vmem:[#allocation2 + $0x108] sm:$0xff]
      %v787 = vld [vmem:[#allocation2 + $0x110] sm:$0xff]
      %v788 = vld [vmem:[#allocation2 + $0x118] sm:$0xff]
      %v789 = vld [vmem:[#allocation2 + $0x120] sm:$0xff]
      %v790 = vld [vmem:[#allocation2 + $0x128] sm:$0xff]
      %v791 = vld [vmem:[#allocation2 + $0x130] sm:$0xff]
      %v792 = vld [vmem:[#allocation2 + $0x138] sm:$0xff]
      %v793 = vld [vmem:[#allocation2 + $0x140] sm:$0xff]
      %v794 = vld [vmem:[#allocation2 + $0x148] sm:$0xff]
      %v795 = vld [vmem:[#allocation2 + $0x150] sm:$0xff]
      %v796 = vld [vmem:[#allocation2 + $0x158] sm:$0xff]
      %v797 = vld [vmem:[#allocation2 + $0x160] sm:$0xff]
      %v798 = vld [vmem:[#allocation2 + $0x168] sm:$0xff]
      %v799 = vld [vmem:[#allocation2 + $0x170] sm:$0xff]
      %v800 = vld [vmem:[#allocation2 + $0x178] sm:$0xff]
      %v801 = vld [vmem:[#allocation2 + $0x180] sm:$0xff]
      %v802 = vld [vmem:[#allocation2 + $0x188] sm:$0xff]
      %v803 = vlaneseq
      %v804 = vshrl.u32 %v803, 7
      %v805 = vsub.s32 0, %v804
      %v806 = vrot.slane %v752, %v805
      %v807 = vmul.f32 %v753, %v806
      %v808 = vmul.f32 %v754, %v806
      %v809 = vmul.f32 %v755, %v806
      %v810 = vmul.f32 %v756, %v806
      %v811 = vmul.f32 %v757, %v806
      %v812 = vmul.f32 %v758, %v806
      %v813 = vmul.f32 %v759, %v806
      %v814 = vmul.f32 %v760, %v806
      %v815 = vmul.f32 %v761, %v806
      %v816 = vmul.f32 %v762, %v806
      %v817 = vmul.f32 %v763, %v806
      %v818 = vmul.f32 %v764, %v806
      %v819 = vmul.f32 %v765, %v806
      %v820 = vmul.f32 %v766, %v806
      %v821 = vmul.f32 %v767, %v806
      %v822 = vmul.f32 %v768, %v806
      %v823 = vmul.f32 %v769, %v806
      %v824 = vmul.f32 %v770, %v806
      %v825 = vmul.f32 %v771, %v806
      %v826 = vmul.f32 %v772, %v806
      %v827 = vmul.f32 %v773, %v806
      %v828 = vmul.f32 %v774, %v806
      %v829 = vmul.f32 %v775, %v806
      %v830 = vmul.f32 %v776, %v806
      %v831 = vmul.f32 %v777, %v806
      %v832 = vmul.f32 %v778, %v806
      %v833 = vmul.f32 %v779, %v806
      %v834 = vmul.f32 %v780, %v806
      %v835 = vmul.f32 %v781, %v806
      %v836 = vmul.f32 %v782, %v806
      %v837 = vmul.f32 %v783, %v806
      %v838 = vmul.f32 %v784, %v806
      %v839 = vmul.f32 %v785, %v806
      %v840 = vmul.f32 %v786, %v806
      %v841 = vmul.f32 %v787, %v806
      %v842 = vmul.f32 %v788, %v806
      %v843 = vmul.f32 %v789, %v806
      %v844 = vmul.f32 %v790, %v806
      %v845 = vmul.f32 %v791, %v806
      %v846 = vmul.f32 %v792, %v806
      %v847 = vmul.f32 %v793, %v806
      %v848 = vmul.f32 %v794, %v806
      %v849 = vmul.f32 %v795, %v806
      %v850 = vmul.f32 %v796, %v806
      %v851 = vmul.f32 %v797, %v806
      %v852 = vmul.f32 %v798, %v806
      %v853 = vmul.f32 %v799, %v806
      %v854 = vmul.f32 %v800, %v806
      %v855 = vmul.f32 %v801, %v806
      %v856 = vmul.f32 %v802, %v806
      %v857 = vlaneseq
      %v858 = vshrl.u32 %v857, 7
      %v859 = vsub.s32 1, %v858
      %v860 = vrot.slane %v752, %v859
      %v861 = vadd.f32 %v807, %v860
      %v862 = vadd.f32 %v808, %v860
      %v863 = vadd.f32 %v809, %v860
      %v864 = vadd.f32 %v810, %v860
      %v865 = vadd.f32 %v811, %v860
      %v866 = vadd.f32 %v812, %v860
      %v867 = vadd.f32 %v813, %v860
      %v868 = vadd.f32 %v814, %v860
      %v869 = vadd.f32 %v815, %v860
      %v870 = vadd.f32 %v816, %v860
      %v871 = vadd.f32 %v817, %v860
      %v872 = vadd.f32 %v818, %v860
      %v873 = vadd.f32 %v819, %v860
      %v874 = vadd.f32 %v820, %v860
      %v875 = vadd.f32 %v821, %v860
      %v876 = vadd.f32 %v822, %v860
      %v877 = vadd.f32 %v823, %v860
      %v878 = vadd.f32 %v824, %v860
      %v879 = vadd.f32 %v825, %v860
      %v880 = vadd.f32 %v826, %v860
      %v881 = vadd.f32 %v827, %v860
      %v882 = vadd.f32 %v828, %v860
      %v883 = vadd.f32 %v829, %v860
      %v884 = vadd.f32 %v830, %v860
      %v885 = vadd.f32 %v831, %v860
      %v886 = vadd.f32 %v832, %v860
      %v887 = vadd.f32 %v833, %v860
      %v888 = vadd.f32 %v834, %v860
      %v889 = vadd.f32 %v835, %v860
      %v890 = vadd.f32 %v836, %v860
      %v891 = vadd.f32 %v837, %v860
      %v892 = vadd.f32 %v838, %v860
      %v893 = vadd.f32 %v839, %v860
      %v894 = vadd.f32 %v840, %v860
      %v895 = vadd.f32 %v841, %v860
      %v896 = vadd.f32 %v842, %v860
      %v897 = vadd.f32 %v843, %v860
      %v898 = vadd.f32 %v844, %v860
      %v899 = vadd.f32 %v845, %v860
      %v900 = vadd.f32 %v846, %v860
      %v901 = vadd.f32 %v847, %v860
      %v902 = vadd.f32 %v848, %v860
      %v903 = vadd.f32 %v849, %v860
      %v904 = vadd.f32 %v850, %v860
      %v905 = vadd.f32 %v851, %v860
      %v906 = vadd.f32 %v852, %v860
      %v907 = vadd.f32 %v853, %v860
      %v908 = vadd.f32 %v854, %v860
      %v909 = vadd.f32 %v855, %v860
      %v910 = vadd.f32 %v856, %v860
      %v911 = vmax.f32 %v861, 0.0
      %v912 = vmax.f32 %v862, 0.0
      %v913 = vmax.f32 %v863, 0.0
      %v914 = vmax.f32 %v864, 0.0
      %v915 = vmax.f32 %v865, 0.0
      %v916 = vmax.f32 %v866, 0.0
      %v917 = vmax.f32 %v867, 0.0
      %v918 = vmax.f32 %v868, 0.0
      %v919 = vmax.f32 %v869, 0.0
      %v920 = vmax.f32 %v870, 0.0
      %v921 = vmax.f32 %v871, 0.0
      %v922 = vmax.f32 %v872, 0.0
      %v923 = vmax.f32 %v873, 0.0
      %v924 = vmax.f32 %v874, 0.0
      %v925 = vmax.f32 %v875, 0.0
      %v926 = vmax.f32 %v876, 0.0
      %v927 = vmax.f32 %v877, 0.0
      %v928 = vmax.f32 %v878, 0.0
      %v929 = vmax.f32 %v879, 0.0
      %v930 = vmax.f32 %v880, 0.0
      %v931 = vmax.f32 %v881, 0.0
      %v932 = vmax.f32 %v882, 0.0
      %v933 = vmax.f32 %v883, 0.0
      %v934 = vmax.f32 %v884, 0.0
      %v935 = vmax.f32 %v885, 0.0
      %v936 = vmax.f32 %v886, 0.0
      %v937 = vmax.f32 %v887, 0.0
      %v938 = vmax.f32 %v888, 0.0
      %v939 = vmax.f32 %v889, 0.0
      %v940 = vmax.f32 %v890, 0.0
      %v941 = vmax.f32 %v891, 0.0
      %v942 = vmax.f32 %v892, 0.0
      %v943 = vmax.f32 %v893, 0.0
      %v944 = vmax.f32 %v894, 0.0
      %v945 = vmax.f32 %v895, 0.0
      %v946 = vmax.f32 %v896, 0.0
      %v947 = vmax.f32 %v897, 0.0
      %v948 = vmax.f32 %v898, 0.0
      %v949 = vmax.f32 %v899, 0.0
      %v950 = vmax.f32 %v900, 0.0
      %v951 = vmax.f32 %v901, 0.0
      %v952 = vmax.f32 %v902, 0.0
      %v953 = vmax.f32 %v903, 0.0
      %v954 = vmax.f32 %v904, 0.0
      %v955 = vmax.f32 %v905, 0.0
      %v956 = vmax.f32 %v906, 0.0
      %v957 = vmax.f32 %v907, 0.0
      %v958 = vmax.f32 %v908, 0.0
      %v959 = vmax.f32 %v909, 0.0
      %v960 = vmax.f32 %v910, 0.0
      %v961 = vpack.c.bf16 %v912, %v911
      %v962 = vpack.c.bf16 %v914, %v913
      %v963 = vpack.c.bf16 %v916, %v915
      %v964 = vpack.c.bf16 %v918, %v917
      %v965 = vpack.c.bf16 %v920, %v919
      %v966 = vpack.c.bf16 %v922, %v921
      %v967 = vpack.c.bf16 %v924, %v923
      %v968 = vpack.c.bf16 %v926, %v925
      %v969 = vpack.c.bf16 %v928, %v927
      %v970 = vpack.c.bf16 %v930, %v929
      %v971 = vpack.c.bf16 %v932, %v931
      %v972 = vpack.c.bf16 %v934, %v933
      %v973 = vpack.c.bf16 %v936, %v935
      %v974 = vpack.c.bf16 %v938, %v937
      %v975 = vpack.c.bf16 %v940, %v939
      %v976 = vpack.c.bf16 %v942, %v941
      %v977 = vpack.c.bf16 %v944, %v943
      %v978 = vpack.c.bf16 %v946, %v945
      %v979 = vpack.c.bf16 %v948, %v947
      %v980 = vpack.c.bf16 %v950, %v949
      %v981 = vpack.c.bf16 %v952, %v951
      %v982 = vpack.c.bf16 %v954, %v953
      %v983 = vpack.c.bf16 %v956, %v955
      %v984 = vpack.c.bf16 %v958, %v957
      %v985 = vpack.c.bf16 %v960, %v959
      %v1011 = vunpack.c.l.b16 %v961
      %v1012 = vunpack.c.h.b16 %v961
      %v1013 = vunpack.c.l.b16 %v962
      %v1014 = vunpack.c.h.b16 %v962
      %v1015 = vunpack.c.l.b16 %v963
      %v1016 = vunpack.c.h.b16 %v963
      %v1017 = vunpack.c.l.b16 %v964
      %v1018 = vunpack.c.h.b16 %v964
      %v1019 = vunpack.c.l.b16 %v965
      %v1020 = vunpack.c.h.b16 %v965
      %v1021 = vunpack.c.l.b16 %v966
      %v1022 = vunpack.c.h.b16 %v966
      %v1023 = vunpack.c.l.b16 %v967
      %v1024 = vunpack.c.h.b16 %v967
      %v1025 = vunpack.c.l.b16 %v968
      %v1026 = vunpack.c.h.b16 %v968
      %v1027 = vunpack.c.l.b16 %v969
      %v1028 = vunpack.c.h.b16 %v969
      %v1029 = vunpack.c.l.b16 %v970
      %v1030 = vunpack.c.h.b16 %v970
      %v1031 = vunpack.c.l.b16 %v971
      %v1032 = vunpack.c.h.b16 %v971
      %v1033 = vunpack.c.l.b16 %v972
      %v1034 = vunpack.c.h.b16 %v972
      %v1035 = vunpack.c.l.b16 %v973
      %v1036 = vunpack.c.h.b16 %v973
      %v1037 = vunpack.c.l.b16 %v974
      %v1038 = vunpack.c.h.b16 %v974
      %v1039 = vunpack.c.l.b16 %v975
      %v1040 = vunpack.c.h.b16 %v975
      %v1041 = vunpack.c.l.b16 %v976
      %v1042 = vunpack.c.h.b16 %v976
      %v1043 = vunpack.c.l.b16 %v977
      %v1044 = vunpack.c.h.b16 %v977
      %v1045 = vunpack.c.l.b16 %v978
      %v1046 = vunpack.c.h.b16 %v978
      %v1047 = vunpack.c.l.b16 %v979
      %v1048 = vunpack.c.h.b16 %v979
      %v1049 = vunpack.c.l.b16 %v980
      %v1050 = vunpack.c.h.b16 %v980
      %v1051 = vunpack.c.l.b16 %v981
      %v1052 = vunpack.c.h.b16 %v981
      %v1053 = vunpack.c.l.b16 %v982
      %v1054 = vunpack.c.h.b16 %v982
      %v1055 = vunpack.c.l.b16 %v983
      %v1056 = vunpack.c.h.b16 %v983
      %v1057 = vunpack.c.l.b16 %v984
      %v1058 = vunpack.c.h.b16 %v984
      %v1059 = vunpack.c.l.b16 %v985
      %v1060 = vunpack.c.h.b16 %v985
      %v1061 = vpack.c.b16 %v1011, %v1011
      %v1062 = vpack.c.b16 %v1012, %v1012
      %v1063 = vpack.c.b16 %v1013, %v1013
      %v1064 = vpack.c.b16 %v1014, %v1014
      %v1065 = vpack.c.b16 %v1015, %v1015
      %v1066 = vpack.c.b16 %v1016, %v1016
      %v1067 = vpack.c.b16 %v1017, %v1017
      %v1068 = vpack.c.b16 %v1018, %v1018
      %v1069 = vpack.c.b16 %v1019, %v1019
      %v1070 = vpack.c.b16 %v1020, %v1020
      %v1071 = vpack.c.b16 %v1021, %v1021
      %v1072 = vpack.c.b16 %v1022, %v1022
      %v1073 = vpack.c.b16 %v1023, %v1023
      %v1074 = vpack.c.b16 %v1024, %v1024
      %v1075 = vpack.c.b16 %v1025, %v1025
      %v1076 = vpack.c.b16 %v1026, %v1026
      %v1077 = vpack.c.b16 %v1027, %v1027
      %v1078 = vpack.c.b16 %v1028, %v1028
      %v1079 = vpack.c.b16 %v1029, %v1029
      %v1080 = vpack.c.b16 %v1030, %v1030
      %v1081 = vpack.c.b16 %v1031, %v1031
      %v1082 = vpack.c.b16 %v1032, %v1032
      %v1083 = vpack.c.b16 %v1033, %v1033
      %v1084 = vpack.c.b16 %v1034, %v1034
      %v1085 = vpack.c.b16 %v1035, %v1035
      %v1086 = vpack.c.b16 %v1036, %v1036
      %v1087 = vpack.c.b16 %v1037, %v1037
      %v1088 = vpack.c.b16 %v1038, %v1038
      %v1089 = vpack.c.b16 %v1039, %v1039
      %v1090 = vpack.c.b16 %v1040, %v1040
      %v1091 = vpack.c.b16 %v1041, %v1041
      %v1092 = vpack.c.b16 %v1042, %v1042
      %v1093 = vpack.c.b16 %v1043, %v1043
      %v1094 = vpack.c.b16 %v1044, %v1044
      %v1095 = vpack.c.b16 %v1045, %v1045
      %v1096 = vpack.c.b16 %v1046, %v1046
      %v1097 = vpack.c.b16 %v1047, %v1047
      %v1098 = vpack.c.b16 %v1048, %v1048
      %v1099 = vpack.c.b16 %v1049, %v1049
      %v1100 = vpack.c.b16 %v1050, %v1050
      %v1101 = vpack.c.b16 %v1051, %v1051
      %v1102 = vpack.c.b16 %v1052, %v1052
      %v1103 = vpack.c.b16 %v1053, %v1053
      %v1104 = vpack.c.b16 %v1054, %v1054
      %v1105 = vpack.c.b16 %v1055, %v1055
      %v1106 = vpack.c.b16 %v1056, %v1056
      %v1107 = vpack.c.b16 %v1057, %v1057
      %v1108 = vpack.c.b16 %v1058, %v1058
      %v1109 = vpack.c.b16 %v1059, %v1059
      %v1110 = vpack.c.b16 %v1060, %v1060
      %1161 = vst [vmem:[#allocation8] sm:$0xf] %v1061
      %1162 = vst [vmem:[#allocation8 + $0x4] sm:$0xf] %v1062
      %1163 = vst [vmem:[#allocation8 + $0x8] sm:$0xf] %v1063
      %1164 = vst [vmem:[#allocation8 + $0xc] sm:$0xf] %v1064
      %1165 = vst [vmem:[#allocation8 + $0x10] sm:$0xf] %v1065
      %1166 = vst [vmem:[#allocation8 + $0x14] sm:$0xf] %v1066
      %1167 = vst [vmem:[#allocation8 + $0x18] sm:$0xf] %v1067
      %1168 = vst [vmem:[#allocation8 + $0x1c] sm:$0xf] %v1068
      %1169 = vst [vmem:[#allocation8 + $0x20] sm:$0xf] %v1069
      %1170 = vst [vmem:[#allocation8 + $0x24] sm:$0xf] %v1070
      %1171 = vst [vmem:[#allocation8 + $0x28] sm:$0xf] %v1071
      %1172 = vst [vmem:[#allocation8 + $0x2c] sm:$0xf] %v1072
      %1173 = vst [vmem:[#allocation8 + $0x30] sm:$0xf] %v1073
      %1174 = vst [vmem:[#allocation8 + $0x34] sm:$0xf] %v1074
      %1175 = vst [vmem:[#allocation8 + $0x38] sm:$0xf] %v1075
      %1176 = vst [vmem:[#allocation8 + $0x3c] sm:$0xf] %v1076
      %1177 = vst [vmem:[#allocation8 + $0x40] sm:$0xf] %v1077
      %1178 = vst [vmem:[#allocation8 + $0x44] sm:$0xf] %v1078
      %1179 = vst [vmem:[#allocation8 + $0x48] sm:$0xf] %v1079
      %1180 = vst [vmem:[#allocation8 + $0x4c] sm:$0xf] %v1080
      %1181 = vst [vmem:[#allocation8 + $0x50] sm:$0xf] %v1081
      %1182 = vst [vmem:[#allocation8 + $0x54] sm:$0xf] %v1082
      %1183 = vst [vmem:[#allocation8 + $0x58] sm:$0xf] %v1083
      %1184 = vst [vmem:[#allocation8 + $0x5c] sm:$0xf] %v1084
      %1185 = vst [vmem:[#allocation8 + $0x60] sm:$0xf] %v1085
      %1186 = vst [vmem:[#allocation8 + $0x64] sm:$0xf] %v1086
      %1187 = vst [vmem:[#allocation8 + $0x68] sm:$0xf] %v1087
      %1188 = vst [vmem:[#allocation8 + $0x6c] sm:$0xf] %v1088
      %1189 = vst [vmem:[#allocation8 + $0x70] sm:$0xf] %v1089
      %1190 = vst [vmem:[#allocation8 + $0x74] sm:$0xf] %v1090
      %1191 = vst [vmem:[#allocation8 + $0x78] sm:$0xf] %v1091
      %1192 = vst [vmem:[#allocation8 + $0x7c] sm:$0xf] %v1092
      %1193 = vst [vmem:[#allocation8 + $0x80] sm:$0xf] %v1093
      %1194 = vst [vmem:[#allocation8 + $0x84] sm:$0xf] %v1094
      %1195 = vst [vmem:[#allocation8 + $0x88] sm:$0xf] %v1095
      %1196 = vst [vmem:[#allocation8 + $0x8c] sm:$0xf] %v1096
      %1197 = vst [vmem:[#allocation8 + $0x90] sm:$0xf] %v1097
      %1198 = vst [vmem:[#allocation8 + $0x94] sm:$0xf] %v1098
      %1199 = vst [vmem:[#allocation8 + $0x98] sm:$0xf] %v1099
      %1200 = vst [vmem:[#allocation8 + $0x9c] sm:$0xf] %v1100
      %1201 = vst [vmem:[#allocation8 + $0xa0] sm:$0xf] %v1101
      %1202 = vst [vmem:[#allocation8 + $0xa4] sm:$0xf] %v1102
      %1203 = vst [vmem:[#allocation8 + $0xa8] sm:$0xf] %v1103
      %1204 = vst [vmem:[#allocation8 + $0xac] sm:$0xf] %v1104
      %1205 = vst [vmem:[#allocation8 + $0xb0] sm:$0xf] %v1105
      %1206 = vst [vmem:[#allocation8 + $0xb4] sm:$0xf] %v1106
      %1207 = vst [vmem:[#allocation8 + $0xb8] sm:$0xf] %v1107
      %1208 = vst [vmem:[#allocation8 + $0xbc] sm:$0xf] %v1108
      %1209 = vst [vmem:[#allocation8 + $0xc0] sm:$0xf] %v1109
      %1210 = vst [vmem:[#allocation8 + $0xc4] sm:$0xf] %v1110
    $region33: #{tpu_custom_call.1} parent=1 // pred_fallthru
      _
    // Predicated region
    $region34: #{tpu_custom_call.1} parent=1 // pred_check
      _
    $region35: #{tpu_custom_call.1} parent=1 // pred_check_branch
      %1212 = sbr.rel (0) target = $region37
    $region36: #{tpu_custom_call.1} parent=1 // pred_region
      %s1214 = ssub.s32 3200, 3200
      %1215 = vsyncadd [#allocation5], %s1214
      %s1216 = sshll.u32 [#allocation8], 4
      %s1217 = int_to_ptr.vmem [resolvable:$true] %s1216
      %1222 = dma.vmem_to_hbm [thread:$0]  %s1217, 3200, %s3, [#allocation5], 64, 64, 4
    $region37: #{tpu_custom_call.1} parent=1 // pred_fallthru
      _
    // Predicated region
    $region38: #{tpu_custom_call.1} parent=1 // pred_check
      _
    $region39: #{tpu_custom_call.1} parent=1 // pred_check_branch
      %1224 = sbr.rel (0) target = $region41
    $region40: #{tpu_custom_call.1} parent=1 // pred_region
      %1225 = dma.done [#allocation5], 3200
    $region41: #{tpu_custom_call.1} parent=1 // pred_fallthru
      _
    %1226 = vsyncpa [#allocation4], 1
    %1227 = vsyncpa [#allocation7], 1
    %1228 = vsyncpa [#allocation5], 1

</llo_original>
